<compile_context>
chip_gen: v5e
topology: v5e:2x2
jax: 0.10.0
libtpu: 0.0.40
codegen_flags: <defaults>
</compile_context>

<pallas_src>
import math

import jax
import jax.numpy as jnp
import numpy as np
from jax.experimental import pallas as pl
from jax.experimental.pallas import tpu as pltpu


# --------------------------------------------------------------------------- #
# Kernel
# --------------------------------------------------------------------------- #
def _make_apply_kernel(func):
    """Kernel that applies `func` to the VMEM-resident block (cast in-kernel)."""

    def kernel(x_ref, o_ref):
        o_ref[...] = func(x_ref[...]).astype(o_ref.dtype)

    return kernel


# --------------------------------------------------------------------------- #
# Generation-aware sizing
# --------------------------------------------------------------------------- #
def _hw_caps():
    """(per_buffer_block_cap_bytes, vmem_limit_bytes) for the local TPU gen.

    Double-buffered footprint is 2 x (in_block + out_block) <= 4 x cap, which
    must stay inside vmem_limit (and well inside physical VMEM):
      v7x : 64 MiB physical  -> 5 MiB blocks, 44 MiB scoped limit
      v6e : 128 MiB physical -> 8 MiB blocks, 64 MiB scoped limit
      v5e / unknown          -> 4 MiB blocks, 32 MiB scoped limit
    """
    try:
        kind = jax.devices()[0].device_kind.lower()
    except Exception:
        kind = ""
    if "v7" in kind:
        return 5 << 20, 44 << 20
    if "v6" in kind:
        return 8 << 20, 64 << 20
    return 4 << 20, 32 << 20


_WHOLE_ARRAY_BYTE_BUDGET = 16 << 20  # in + out combined, safe on every gen


# --------------------------------------------------------------------------- #
# Tiled elementwise path (shape-preserving funcs)
# --------------------------------------------------------------------------- #
def _pick_lane_width(total, min_rows):
    """Lane width (multiple of 128).  Prefer wide & dividing with a sublane-
    dense row count; returns (lanes, needs_padding)."""
    for cand in (2048, 1024, 512, 256, 128):
        if total % cand == 0 and total // cand >= min_rows:
            return cand, False
    for cand in (512, 256, 128):
        if total % cand == 0:
            return cand, False
    return 128, True  # pad flattened length up to a multiple of 128


def _pick_row_tile(rows, lanes, in_item, out_item, cap, min_rows, total_bytes):
    """Row tile: dtype-aware sublane multiple, sized to the per-buffer byte
    cap, with >= 2 grid steps guaranteed for arrays above ~2 MiB."""
    if rows <= min_rows:
        return rows  # single full-extent block (exempt from (8,128) rule)
    max_rows = max(min_rows,
                   (cap // (lanes * max(in_item, out_item))) // min_rows * min_rows)
    tr = min((rows // min_rows) * min_rows, max_rows)
    tr = max(tr, min_rows)
    if total_bytes > (2 << 20):
        # HBM-bound kernel: make sure there are >= 2 steps so v7x can shard
        # the grid across both TensorCores and pipelining has work to overlap.
        while -(-rows // tr) < 2 and tr > min_rows:
            tr = max(min_rows, ((tr // 2) // min_rows) * min_rows)
    return tr


def _apply_shape_preserving_tiled(func, x, out_dtype):
    """Run `func` elementwise over a lane/sublane-dense pipelined tiling."""
    total = int(math.prod(x.shape)) if x.ndim else 1
    if total == 0:
        return jnp.zeros(x.shape, out_dtype)

    in_item = np.dtype(x.dtype).itemsize
    out_item = np.dtype(out_dtype).itemsize
    # Native sublane tile: 8 rows f32, 16 bf16, 32 int8/fp8 (narrower of the two
    # dtypes sets the requirement).
    min_rows = max(8, 32 // max(1, min(in_item, out_item)))

    cap, vmem_limit = _hw_caps()

    lanes, needs_pad = _pick_lane_width(total, min_rows)
    padded_total = -(-total // lanes) * lanes
    rows = padded_total // lanes

    xf = jnp.reshape(x, (-1,))                       # metadata-only
    if padded_total != total:
        xf = jnp.pad(xf, (0, padded_total - total))  # keeps the pipelined path
    x2 = jnp.reshape(xf, (rows, lanes))

    total_bytes = padded_total * max(in_item, out_item)
    tr = _pick_row_tile(rows, lanes, in_item, out_item, cap, min_rows, total_bytes)
    grid = (pl.cdiv(rows, tr),)

    kwargs = {}
    if x2.dtype == jnp.dtype(out_dtype):
        # Same shape & dtype: let the output reuse the input HBM buffer.
        kwargs["input_output_aliases"] = {0: 0}

    out2 = pl.pallas_call(
        _make_apply_kernel(func),
        out_shape=jax.ShapeDtypeStruct((rows, lanes), out_dtype),
        grid=grid,
        in_specs=[pl.BlockSpec((tr, lanes), lambda i: (i, 0))],
        out_specs=pl.BlockSpec((tr, lanes), lambda i: (i, 0)),
        compiler_params=pltpu.CompilerParams(
            dimension_semantics=("parallel",),  # shard grid across TCs (v7x)
            vmem_limit_bytes=vmem_limit,
        ),
        **kwargs,
    )(x2)

    outf = jnp.reshape(out2, (-1,))
    if padded_total != total:
        outf = outf[:total]
    return jnp.reshape(outf, x.shape)


# --------------------------------------------------------------------------- #
# Whole-array path (shape-preserving, cross-element funcs)
# --------------------------------------------------------------------------- #
def _apply_shape_preserving_whole(func, x, out_dtype):
    """Exact whole-array VMEM block (needed when `func` has cross-element
    dependencies).  Falls back to plain JAX when it cannot fit in VMEM."""
    n = int(math.prod(x.shape)) if x.ndim else 1
    in_bytes = n * np.dtype(x.dtype).itemsize
    out_bytes = n * np.dtype(out_dtype).itemsize
    if in_bytes + out_bytes > _WHOLE_ARRAY_BYTE_BUDGET:
        # TODO(synk): no generic Pallas tiling for cross-element lambdas that
        # exceed VMEM; plain XLA is strictly better than a failing single block.
        return func(x)

    _, vmem_limit = _hw_caps()
    return pl.pallas_call(
        _make_apply_kernel(func),
        out_shape=jax.ShapeDtypeStruct(x.shape, out_dtype),
        in_specs=[pl.BlockSpec(memory_space=pltpu.MemorySpace.VMEM)],
        out_specs=pl.BlockSpec(memory_space=pltpu.MemorySpace.VMEM),
        compiler_params=pltpu.CompilerParams(vmem_limit_bytes=vmem_limit),
    )(x)


# --------------------------------------------------------------------------- #
# Module
# --------------------------------------------------------------------------- #
class Lambda:
    """Pallas port of the PyTorch Lambda module: forward(x) = func(x).

    `elementwise=True` (default) declares that a shape-preserving `func` acts
    per-element, so it can be tiled across a pipelined grid (blocks are
    contiguous chunks of the flattened array, exact for any per-element func).
    Pass `elementwise=False` for shape-preserving funcs with cross-element
    dependencies (softmax/normalization-style lambdas); those run as a single
    whole-array block when they fit in VMEM, else plain JAX.
    """

    def __init__(self, func, elementwise=True):
        self.func = func
        self.elementwise = elementwise

    def __call__(self, x):
        try:
            out_sds = jax.eval_shape(self.func, x)
        except Exception:
            return self.func(x)
        if not hasattr(out_sds, "shape") or not hasattr(out_sds, "dtype"):
            # func returns a pytree / non-array; no Pallas equivalent.
            return self.func(x)

        in_count = int(math.prod(x.shape)) if x.ndim else 1
        out_count = int(math.prod(out_sds.shape)) if len(out_sds.shape) else 1

        # ---- Shape-preserving func: run func inside a Pallas kernel. -------
        if tuple(out_sds.shape) == tuple(x.shape):
            if self.elementwise:
                return _apply_shape_preserving_tiled(self.func, x, out_sds.dtype)
            return _apply_shape_preserving_whole(self.func, x, out_sds.dtype)

        # ---- Pure view (the flatten before the FC head in convnet.py). -----
        if out_count == in_count:
            # Row-major reshape of a contiguous array == torch .view();
            # metadata-only in XLA, so no kernel / no HBM round trip.
            out = jnp.reshape(x, out_sds.shape)
            if out.dtype != out_sds.dtype:
                out = out.astype(out_sds.dtype)
            return out

        # ---- General shape-changing funcs (reductions / pooling lambdas). --
        # TODO(synk): no generic Pallas kernel for arbitrary shape-changing
        # lambdas; fall back to plain JAX which matches Lambda.forward exactly.
        return self.func(x)


# --------------------------------------------------------------------------- #
# Self-test
# --------------------------------------------------------------------------- #
if __name__ == "__main__":
    key = jax.random.PRNGKey(0)
    # NCHW, matching the PyTorch conv stack that feeds this Lambda.
    x = jax.random.normal(key, (2, 4, 16, 16), dtype=jnp.float32)

    # 1) Lambda as used in convnet.py: flatten before the linear head.
    #    (pure view -> metadata-only reshape, no kernel)
    flatten = Lambda(lambda t: t.reshape(t.shape[0], -1))
    y_flat = jax.block_until_ready(flatten(x))
    ref_flat = np.asarray(x).reshape(x.shape[0], -1)
    assert y_flat.shape == (2, 4 * 16 * 16)
    np.testing.assert_allclose(np.asarray(y_flat), ref_flat, rtol=0, atol=0)

    # 2) Elementwise func: runs inside the tiled Pallas kernel on lane-dense
    #    (rows, lanes) blocks (same-dtype -> input/output aliased).
    act = Lambda(lambda t: jnp.tanh(t) * 0.5)
    y_act = jax.block_until_ready(act(x))
    ref_act = np.tanh(np.asarray(x)) * 0.5
    assert y_act.shape == x.shape
    np.testing.assert_allclose(np.asarray(y_act), ref_act, rtol=1e-5, atol=1e-5)

    # 3) bf16 elementwise: exercises the dtype-aware (16-row) sublane tile.
    xb = x.astype(jnp.bfloat16)
    act_b = Lambda(lambda t: jax.nn.relu(t) + 1.0)
    y_b = jax.block_until_ready(act_b(xb))
    ref_b = np.maximum(np.asarray(xb, dtype=np.float32), 0.0) + 1.0
    np.testing.assert_allclose(np.asarray(y_b, dtype=np.float32), ref_b,
                               rtol=2e-2, atol=2e-2)

    # 4) Non-128-divisible element count: exercises the pad + slice path
    #    (previously fell back to an unpipelined whole-array kernel).
    x_odd = jax.random.normal(jax.random.PRNGKey(1), (3, 5, 7), dtype=jnp.float32)
    scale = Lambda(lambda t: t * 2.0 + 1.0)
    y_odd = jax.block_until_ready(scale(x_odd))
    np.testing.assert_allclose(np.asarray(y_odd), np.asarray(x_odd) * 2.0 + 1.0,
                               rtol=1e-6, atol=1e-6)

    # 5) Shape-preserving but NOT elementwise: exact whole-array block path.
    norm = Lambda(lambda t: t - jnp.mean(t), elementwise=False)
    y_norm = jax.block_until_ready(norm(x))
    ref_norm = np.asarray(x) - np.mean(np.asarray(x))
    np.testing.assert_allclose(np.asarray(y_norm), ref_norm, rtol=1e-5, atol=1e-5)

    print("KERNEL_OK")
</pallas_src>

<mosaic_0001>
module attributes {stable_mosaic.version = 11 : i64} {
  func.func @kernel(%arg0: i32, %arg1: memref<8x256xf32, #tpu.memory_space<vmem>>, %arg2: memref<8x256xf32, #tpu.memory_space<vmem>>) attributes {dimension_semantics = [#tpu.dimension_semantics<parallel>], iteration_bounds = array<i64: 1>, scalar_prefetch = 0 : i64, scratch_operands = 0 : i64, tpu.core_type = #tpu.core_type<tc>, window_params = [{transform_indices = @transform_0, window_bounds = array<i64: 8, 256>}, {transform_indices = @transform_1, window_bounds = array<i64: 8, 256>}]} {
    %c0 = arith.constant 0 : index
    %c0_0 = arith.constant 0 : index
    %0 = vector.load %arg1[%c0, %c0_0] : memref<8x256xf32, #tpu.memory_space<vmem>>, vector<8x256xf32>
    %1 = math.tanh %0 : vector<8x256xf32>
    %cst = arith.constant 5.000000e-01 : f32
    %2 = vector.broadcast %cst : f32 to vector<8x256xf32>
    %3 = arith.mulf %1, %2 : vector<8x256xf32>
    %c0_1 = arith.constant 0 : index
    %c0_2 = arith.constant 0 : index
    %4 = vector.load %arg2[%c0_1, %c0_2] : memref<8x256xf32, #tpu.memory_space<vmem>>, vector<8x256xf32>
    tpu.vector_store %arg2[%c0_1, %c0_2], %3 {strides = array<i32>} : memref<8x256xf32, #tpu.memory_space<vmem>>, vector<8x256xf32>,
    return
  }
  func.func @transform_0(%arg0: i32) -> (i32, i32) {
    %c0_i32 = arith.constant 0 : i32
    %c0_i32_0 = arith.constant 0 : i32
    return %arg0, %c0_i32 : i32, i32
  }
  func.func @transform_1(%arg0: i32) -> (i32, i32) {
    %c0_i32 = arith.constant 0 : i32
    %c0_i32_0 = arith.constant 0 : i32
    return %arg0, %c0_i32 : i32, i32
  }
}

</mosaic_0001>

<llo_original>
// kernel: tpu_custom_call.1
$region0: #{tpu_custom_call.1}
  #allocation0 [shape = 'u32[]', space=smem, size = 0x4, offset = 0x4, fixed_abs, tag = 'smem constant byte address 0x4 - core index']
  #allocation1 [shape = 'u32[72,128]{1,0:T(1,128)}', space=vmem, size = 0x9000, scoped, tag = 'internal scratch']
  %s0 = inlined_call_operand.hbm [shape: f32[8,256], index: 0, kind: input, shape index: {}, may-alias: {0,1}]
  %s1 = inlined_call_operand.hbm [shape: f32[8,256], index: 1, kind: output, shape index: {}, may-alias: {0,1}]
  %s2 = sld [smem:[#allocation0]]
  $region18: #{tpu_custom_call.1} parent=0
    _
  %s4 = ssub.s32 1, %s2
  %s5 = scalar_select 0, %s4, %s2
  $region1: #{tpu_custom_call.1} parent=0
    #allocation2 [shape = 'u8[8192]{0}', space=vmem, size = 0x2000, scoped, tag = 'input window, operand 0, single buffered']
    #allocation3 [shape = 's32[1]{0}', space=sflag, size = 0x4, scoped, tag = 'scoped memory for tpu_custom_call.1']
    #allocation4 [shape = 's32[1]{0}', space=sflag, size = 0x4, scoped, tag = 'scoped memory for tpu_custom_call.1']
    #allocation5 [shape = 'u8[8192]{0}', space=vmem, size = 0x2000, scoped, tag = 'output window, operand 0, single buffered']
    %6 = vsyncpa [#allocation3], 0
    %7 = vsyncpa [#allocation4], 0
    // Predicated region
    $region2: #{tpu_custom_call.1} parent=1 // pred_check
      _
    $region3: #{tpu_custom_call.1} parent=1 // pred_check_branch
      %9 = sbr.rel (0) target = $region5
    $region4: #{tpu_custom_call.1} parent=1 // pred_region
      %11 = vsyncadd [#allocation3], 0
      %s13 = sshll.u32 %s0, 4
      %s14 = int_to_ptr.hbm [resolvable:$true] %s13
      %s15 = sshll.u32 [#allocation2], 4
      %s16 = int_to_ptr.vmem [resolvable:$true] %s15
      %18 = dma.hbm_to_vmem [thread:$0]  %s14, 256, %s16, [#allocation3]
    $region5: #{tpu_custom_call.1} parent=1 // pred_fallthru
      _
    // Predicated region
    $region6: #{tpu_custom_call.1} parent=1 // pred_check
      _
    $region7: #{tpu_custom_call.1} parent=1 // pred_check_branch
      %20 = sbr.rel (0) target = $region9
    $region8: #{tpu_custom_call.1} parent=1 // pred_region
      %22 = dma.done [#allocation3], 256
    $region9: #{tpu_custom_call.1} parent=1 // pred_fallthru
      _
    %v23 = vld [vmem:[#allocation2] sm:$0xff]
    %v24 = vld [vmem:[#allocation2 + $0x8] sm:$0xff]
    %v25 = vtanh.pop %v23
    %v26 = vtanh.pop %v24
    %v27 = vmul.f32 %v25, 0.5
    %v28 = vmul.f32 %v26, 0.5
    %29 = vst [vmem:[#allocation5] sm:$0xff] %v27
    %30 = vst [vmem:[#allocation5 + $0x8] sm:$0xff] %v28
    // Predicated region
    $region10: #{tpu_custom_call.1} parent=1 // pred_check
      _
    $region11: #{tpu_custom_call.1} parent=1 // pred_check_branch
      %32 = sbr.rel (0) target = $region13
    $region12: #{tpu_custom_call.1} parent=1 // pred_region
      %34 = vsyncadd [#allocation4], 0
      %s36 = sshll.u32 [#allocation5], 4
      %s37 = int_to_ptr.vmem [resolvable:$true] %s36
      %s38 = sshll.u32 %s1, 4
      %s39 = int_to_ptr.hbm [resolvable:$true] %s38
      %41 = dma.vmem_to_hbm [thread:$0]  %s37, 256, %s39, [#allocation4]
    $region13: #{tpu_custom_call.1} parent=1 // pred_fallthru
      _
    // Predicated region
    $region14: #{tpu_custom_call.1} parent=1 // pred_check
      _
    $region15: #{tpu_custom_call.1} parent=1 // pred_check_branch
      %43 = sbr.rel (0) target = $region17
    $region16: #{tpu_custom_call.1} parent=1 // pred_region
      %45 = dma.done [#allocation4], 256
    $region17: #{tpu_custom_call.1} parent=1 // pred_fallthru
      _
    %46 = vsyncpa [#allocation3], 1
    %47 = vsyncpa [#allocation4], 1

</llo_original>
